<compile_context>
chip_gen: v5e
topology: v5e:2x2
jax: 0.10.0
libtpu: 0.0.40
codegen_flags: <defaults>
</compile_context>

<pallas_src>
import jax
import jax.numpy as jnp
from jax.experimental import pallas as pl
from jax.experimental.pallas import tpu as pltpu


def _round_up(x, m):
    return ((x + m - 1) // m) * m


def _cdiv(a, b):
    return (a + b - 1) // b


# Conservative double-buffered VMEM budget: 2x(in) + 2x(out) blocks must fit
# under this, leaving headroom below v5e's 16 MiB scoped default (and well
# inside v6e/v7x's 32 MiB) once Mosaic internal scratch is added.
_VMEM_BUDGET_BYTES = 12 * 1024 * 1024


def _transpose_kernel(x_ref, o_ref):
    # x_ref: (TM, TN) input tile; o_ref: (TN, TM) output tile.
    # The in-tile transpose lowers to the XLU (vxpose); the tile-position swap
    # across the grid is handled by the output BlockSpec index_map.
    # TODO(synk): on v7x (3.2 TB/s HBM) check bundle dumps — if the XLU/store
    # path binds instead of HBM, prefer fusing the transpose into the consumer
    # (dot_general dimension numbers) rather than tuning this kernel.
    o_ref[...] = x_ref[...].T


def _pick_tiles(M, N, itemsize, tile_m, tile_n):
    # dtype-aware defaults: keep each block ~1-2 MiB regardless of element
    # width so per-step overhead (~0.35 us) stays amortized and DMAs stay long.
    factor = max(1, 4 // max(1, itemsize))
    if tile_m is None:
        tile_m = 1024            # output block's last dim -> wide, lane-dense vst
    if tile_n is None:
        tile_n = 512 * factor

    # Lane-dense 128-multiples, never wider than the (rounded-up) array dims.
    tm = _round_up(max(128, min(tile_m, _round_up(M, 128))), 128)
    tn = _round_up(max(128, min(tile_n, _round_up(N, 128))), 128)

    # Clamp caller-supplied tiles so 4 * tm * tn * itemsize fits the budget.
    while 4 * tm * tn * itemsize > _VMEM_BUDGET_BYTES and (tm > 128 or tn > 128):
        if tm >= tn and tm > 128:
            tm = max(128, ((tm // 2) // 128) * 128)
        elif tn > 128:
            tn = max(128, ((tn // 2) // 128) * 128)
        else:
            break

    # Megacore guard (v7x has 2 TCs): with tiny grids one core idles and the
    # 2-3 step pipeline never amortizes its prologue/epilogue; shrink toward
    # 256-wide tiles until the grid has several steps.
    while (_cdiv(M, tm) * _cdiv(N, tn) < 8) and (tm > 256 or tn > 256):
        if tm >= tn and tm > 256:
            tm = max(256, ((tm // 2) // 128) * 128)
        elif tn > 256:
            tn = max(256, ((tn // 2) // 128) * 128)
        else:
            break
    return tm, tn


def _transpose_2d(x, tm, tn):
    M, N = x.shape
    itemsize = jnp.dtype(x.dtype).itemsize
    # cdiv grid over the UNPADDED array: partial edge blocks are masked on
    # writeback by Pallas (no wrapper-side pad/slice, no extra HBM traffic).
    # Grid order (N-blocks, M-blocks): the M-block axis varies fastest, so
    # consecutive steps write adjacent tm-wide column strips of the output.
    grid = (_cdiv(N, tn), _cdiv(M, tm))
    return pl.pallas_call(
        _transpose_kernel,
        out_shape=jax.ShapeDtypeStruct((N, M), x.dtype),
        grid_spec=pltpu.PrefetchScalarGridSpec(
            num_scalar_prefetch=0,
            grid=grid,
            in_specs=[pl.BlockSpec((tm, tn), lambda j, i: (i, j))],
            # Output tile lands at the mirrored grid position; its last dim
            # (tm) is a multiple of 128 -> lane-dense stores on full blocks.
            out_specs=pl.BlockSpec((tn, tm), lambda j, i: (j, i)),
        ),
        compiler_params=pltpu.CompilerParams(
            dimension_semantics=("parallel", "parallel"),
        ),
        cost_estimate=pl.CostEstimate(
            flops=0,
            transcendentals=0,
            bytes_accessed=2 * M * N * itemsize,
        ),
    )(x)


def transpose_layer(x, dim1=0, dim2=1, *, tile_m=None, tile_n=None):
    """Pallas equivalent of torch.transpose(x, dim1, dim2) for 2D inputs."""
    # TODO(synk): >2-D inputs / dim pairs other than (0, 1) are not lowered
    # here; the SFBC TransposeLayer default (dim1=0, dim2=1 on 2-D features) is.
    assert x.ndim == 2, "kernel implements the 2D (dim1, dim2) in {0, 1} case"
    d1, d2 = dim1 % x.ndim, dim2 % x.ndim
    assert {d1, d2} == {0, 1}, "only the (0, 1) transpose is supported"

    M, N = x.shape
    itemsize = jnp.dtype(x.dtype).itemsize
    tm, tn = _pick_tiles(M, N, itemsize, tile_m, tile_n)
    return _transpose_2d(x, tm, tn)


if __name__ == "__main__":
    key = jax.random.PRNGKey(0)
    k1, k2, k3, k4 = jax.random.split(key, 4)

    # Case 1: tile-divisible shape, explicit small tiles -> multi-block grid,
    # exercises the grid-coordinate swap in out_specs.
    M1, N1 = 256, 384
    x1 = jax.random.normal(k1, (M1, N1), dtype=jnp.float32)
    out1 = jax.block_until_ready(transpose_layer(x1, 0, 1, tile_m=128, tile_n=128))
    assert out1.shape == (N1, M1) and out1.dtype == x1.dtype
    assert jnp.array_equal(out1, jnp.transpose(x1, (1, 0)))

    # Case 2: ragged shape (not a multiple of 128) with default tiles ->
    # exercises the pad-free cdiv grid with masked partial blocks.
    M2, N2 = 96, 200
    x2 = jax.random.normal(k2, (M2, N2), dtype=jnp.float32)
    out2 = jax.block_until_ready(transpose_layer(x2, 0, 1))
    assert out2.shape == (N2, M2) and out2.dtype == x2.dtype
    assert jnp.array_equal(out2, jnp.transpose(x2, (1, 0)))

    # Case 3: ragged on BOTH dims with small tiles -> partial edge blocks on
    # every grid edge; verifies no garbage from the undefined padded input
    # region lands in valid output (masked writeback).
    M3, N3 = 150, 300
    x3 = jax.random.normal(k3, (M3, N3), dtype=jnp.float32)
    out3 = jax.block_until_ready(transpose_layer(x3, 0, 1, tile_m=128, tile_n=128))
    assert out3.shape == (N3, M3) and out3.dtype == x3.dtype
    assert jnp.array_equal(out3, jnp.transpose(x3, (1, 0)))

    # Case 4: bf16 input with default tiles -> exercises dtype-aware tile
    # sizing (blocks stay ~1-2 MiB for 2-byte elements).
    M4, N4 = 256, 1024
    x4 = jax.random.normal(k4, (M4, N4), dtype=jnp.float32).astype(jnp.bfloat16)
    out4 = jax.block_until_ready(transpose_layer(x4, 0, 1))
    assert out4.shape == (N4, M4) and out4.dtype == x4.dtype
    assert jnp.array_equal(out4, jnp.transpose(x4, (1, 0)))

    print("KERNEL_OK")
</pallas_src>

<mosaic_0001>
module attributes {stable_mosaic.version = 11 : i64} {
  func.func @_transpose_kernel(%arg0: i32, %arg1: i32, %arg2: memref<128x128xf32, #tpu.memory_space<vmem>>, %arg3: memref<128x128xf32, #tpu.memory_space<vmem>>) attributes {dimension_semantics = [#tpu.dimension_semantics<parallel>, #tpu.dimension_semantics<parallel>], iteration_bounds = array<i64: 3, 2>, scalar_prefetch = 0 : i64, scratch_operands = 0 : i64, tpu.core_type = #tpu.core_type<tc>, window_params = [{transform_indices = @transform_0, window_bounds = array<i64: 128, 128>}, {transform_indices = @transform_1, window_bounds = array<i64: 128, 128>}]} {
    %c0 = arith.constant 0 : index
    %c0_0 = arith.constant 0 : index
    %0 = vector.load %arg2[%c0, %c0_0] : memref<128x128xf32, #tpu.memory_space<vmem>>, vector<128x128xf32>
    %1 = tpu.transpose %0, [1, 0] : vector<128x128xf32> -> vector<128x128xf32>
    %c0_1 = arith.constant 0 : index
    %c0_2 = arith.constant 0 : index
    %2 = vector.load %arg3[%c0_1, %c0_2] : memref<128x128xf32, #tpu.memory_space<vmem>>, vector<128x128xf32>
    tpu.vector_store %arg3[%c0_1, %c0_2], %1 {strides = array<i32>} : memref<128x128xf32, #tpu.memory_space<vmem>>, vector<128x128xf32>,
    return
  }
  func.func @transform_0(%arg0: i32, %arg1: i32) -> (i32, i32) {
    %c0_i32 = arith.constant 0 : i32
    return %arg1, %arg0 : i32, i32
  }
  func.func @transform_1(%arg0: i32, %arg1: i32) -> (i32, i32) {
    %c0_i32 = arith.constant 0 : i32
    return %arg0, %arg1 : i32, i32
  }
}

</mosaic_0001>

<llo_original>
// kernel: tpu_custom_call.1
$region0: #{tpu_custom_call.1}
  #allocation0 [shape = 'u32[]', space=smem, size = 0x4, offset = 0x4, fixed_abs, tag = 'smem constant byte address 0x4 - core index']
  #allocation1 [shape = 'u32[72,128]{1,0:T(1,128)}', space=vmem, size = 0x9000, scoped, tag = 'internal scratch']
  %s0 = inlined_call_operand.hbm [shape: f32[256,384], index: 0, kind: input, shape index: {}]
  %s1 = inlined_call_operand.hbm [shape: f32[384,256], index: 1, kind: output, shape index: {}]
  %s2 = sld [smem:[#allocation0]]
  $region41: #{tpu_custom_call.1} parent=0
    _
  %s4 = ssub.s32 1, %s2
  %s5 = scalar_select 0, %s4, %s2
  $region1: #{tpu_custom_call.1} parent=0
    #allocation2 [shape = 'u8[131072]{0}', space=vmem, size = 0x20000, scoped, tag = 'input window, operand 0']
    #allocation3 [shape = 's32[2]{0}', space=sflag, size = 0x8, scoped, tag = 'scoped memory for tpu_custom_call.1']
    #allocation4 [shape = 's32[2]{0}', space=sflag, size = 0x8, scoped, tag = 'scoped memory for tpu_custom_call.1']
    #allocation5 [shape = 'u8[131072]{0}', space=vmem, size = 0x20000, scoped, tag = 'output window, operand 0']
    %6 = vsyncpa [#allocation3], 0
    %s7 = scalar_lea.sflag [#allocation3], 1
    %8 = vsyncpa %s7, 0
    %9 = vsyncpa [#allocation4], 0
    %s10 = scalar_lea.sflag [#allocation4], 1
    %11 = vsyncpa %s10, 0
    loop: start=0, step=1, limit=8
    $region2: #{tpu_custom_call.1} parent=1 // loop_pre_header
      _
    $region3: #{tpu_custom_call.1} parent=1 // loop_header
      %s13 = sphi 0, %s17
      %p14 = scmp.ge.s32.totalorder %s13, 8
      %s20 = sphi 0, %s32
      %s21 = sphi 0, %s28
      %s22 = sphi 0, %s20
      %s23 = sphi 0, %s21
      %s24 = sphi 0, %s22
      %s25 = sphi 0, %s23
      %s37 = sphi 0, %s39
      %s40 = sphi 0, %s37
      %s41 = sphi 0, %s40
      %s57 = sphi 0, %s41
      %s65 = sphi 0, %s67
      %s68 = sphi 0, %s65
      %s69 = sphi 0, %s68
      %s85 = sphi 0, %s69
    $region4: #{tpu_custom_call.1} parent=1 // loop_header_branch
      %16 = sbr.rel (%p14) target = $region8
    $region5: #{tpu_custom_call.1} parent=1 // loop_body
      %s18 = ssub.s32 %s13, 1
      %s19 = ssub.s32 %s13, 2
      %s26 = sadd.s32 1, %s21
      %p27 = scmp.ge.s32.totalorder %s26, 2
      %s28 = scalar_select %p27, 0, %s26
      %s29 = sadd.s32 1, %s20
      %s30 = scalar_select %p27, %s29, %s20
      %p31 = scmp.ge.s32.totalorder %s30, 3
      %s32 = scalar_select %p31, 0, %s30
      %s33 = ssub.s32 %s21, %s28
      %s34 = ssub.s32 %s20, %s32
      %s35 = sor.u32 %s33, %s34
      %p36 = scmp.eq.s32.totalorder %s35, 0
      %s38 = sadd.s32 %s37, 1
      %s39 = scalar_select %p36, %s37, %s38
      %p42 = pneg %p36
      %p43 = scmp.eq.s32.totalorder %s13, 5
      %p44 = por %p42, %p43
      %p45 = scmp.ne.s32.totalorder %s37, %s40
      %p46 = scmp.eq.s32.totalorder %s13, 0
      %p47 = por %p45, %p46
      %p48 = scmp.ne.s32.totalorder %s37, %s40
      %p49 = scmp.eq.s32.totalorder %s18, 5
      %p50 = por %p48, %p49
      %p51 = scmp.ne.s32.totalorder %s40, %s41
      %p52 = scmp.eq.s32.totalorder %s18, 0
      %p53 = por %p51, %p52
      %p54 = scmp.ne.s32.totalorder %s40, %s41
      %p55 = scmp.eq.s32.totalorder %s19, 5
      %p56 = por %p54, %p55
      %p58 = scmp.ne.s32.totalorder %s41, %s57
      %p59 = scmp.eq.s32.totalorder %s19, 0
      %p60 = por %p58, %p59
      %s61 = ssub.s32 %s20, %s32
      %s62 = ssub.s32 %s21, %s28
      %s63 = sor.u32 %s61, %s62
      %p64 = scmp.eq.s32.totalorder %s63, 0
      %s66 = sadd.s32 %s65, 1
      %s67 = scalar_select %p64, %s65, %s66
      %p70 = pneg %p64
      %p71 = scmp.eq.s32.totalorder %s13, 5
      %p72 = por %p70, %p71
      %p73 = scmp.ne.s32.totalorder %s65, %s68
      %p74 = scmp.eq.s32.totalorder %s13, 0
      %p75 = por %p73, %p74
      %p76 = scmp.ne.s32.totalorder %s65, %s68
      %p77 = scmp.eq.s32.totalorder %s18, 5
      %p78 = por %p76, %p77
      %p79 = scmp.ne.s32.totalorder %s68, %s69
      %p80 = scmp.eq.s32.totalorder %s18, 0
      %p81 = por %p79, %p80
      %p82 = scmp.ne.s32.totalorder %s68, %s69
      %p83 = scmp.eq.s32.totalorder %s19, 5
      %p84 = por %p82, %p83
      %p86 = scmp.ne.s32.totalorder %s69, %s85
      %p87 = scmp.eq.s32.totalorder %s19, 0
      %p88 = por %p86, %p87
      %p89 = scmp.le.s32.totalorder 1, %s13
      %p90 = scmp.lt.s32.totalorder %s13, 7
      %p91 = pnand %p89, %p90
      %p92 = pneg %p91
      // Predicated region
      $region9: #{tpu_custom_call.1} parent=5 // pred_check
        _
      $region10: #{tpu_custom_call.1} parent=5 // pred_check_branch
        %94 = sbr.rel (%p91) target = $region12
      $region11: #{tpu_custom_call.1} parent=5 // pred_region
        %s95 = ssub.s32 %s13, 1
      $region12: #{tpu_custom_call.1} parent=5 // pred_fallthru
        _
      %p96 = scmp.lt.s32.totalorder %s13, 6
      // Predicated region
      $region13: #{tpu_custom_call.1} parent=5 // pred_check
        %p97 = pneg %p96
      $region14: #{tpu_custom_call.1} parent=5 // pred_check_branch
        %99 = sbr.rel (%p97) target = $region16
      $region15: #{tpu_custom_call.1} parent=5 // pred_region
        // Predicated region
        $region17: #{tpu_custom_call.1} parent=15 // pred_check
          %p100 = pneg %p47
        $region18: #{tpu_custom_call.1} parent=15 // pred_check_branch
          %102 = sbr.rel (%p100) target = $region20
        $region19: #{tpu_custom_call.1} parent=15 // pred_region
          %s103 = sand.u32 %s37, 1
          %s104 = scalar_lea.sflag [#allocation3], %s103
          %s105 = sand.u32 %s37, 1
          %s106 = smul.addr %s105, 128
          %s107 = scalar_lea.vmem [#allocation2], %s106
          %s108 = smul.u32 16, %s21
          %110 = vsyncadd %s104, 0
          %s111 = smul.addr %s108, 3
          %s112 = sadd.s32 %s20, %s111
          %s113 = smul.addr %s112, 8
          %s114 = scalar_lea.hbm %s0, %s113
          %s115 = sshll.u32 %s114, 4
          %s116 = int_to_ptr.hbm [resolvable:$true] %s115
          %s117 = sshll.u32 %s107, 4
          %s118 = int_to_ptr.vmem [resolvable:$true] %s117
          %123 = dma.hbm_to_vmem [thread:$0]  %s116, 2048, %s118, %s104, 384, 128, 8
        $region20: #{tpu_custom_call.1} parent=15 // pred_fallthru
          _
      $region16: #{tpu_custom_call.1} parent=5 // pred_fallthru
        _
      %p124 = scmp.le.s32.totalorder 1, %s13
      %p125 = scmp.lt.s32.totalorder %s13, 7
      %p126 = pnand %p124, %p125
      %p127 = pneg %p126
      // Predicated region
      $region21: #{tpu_custom_call.1} parent=5 // pred_check
        _
      $region22: #{tpu_custom_call.1} parent=5 // pred_check_branch
        %129 = sbr.rel (%p126) target = $region24
      $region23: #{tpu_custom_call.1} parent=5 // pred_region
        %s130 = ssub.s32 %s13, 1
        %s131 = sand.u32 %s40, 1
        %s132 = scalar_lea.sflag [#allocation3], %s131
        %s133 = sand.u32 %s40, 1
        %s134 = smul.addr %s133, 128
        %s135 = scalar_lea.vmem [#allocation2], %s134
        // Predicated region
        $region25: #{tpu_custom_call.1} parent=23 // pred_check
          %p136 = pneg %p53
        $region26: #{tpu_custom_call.1} parent=23 // pred_check_branch
          %138 = sbr.rel (%p136) target = $region28
        $region27: #{tpu_custom_call.1} parent=23 // pred_region
          %140 = dma.done %s132, 2048
        $region28: #{tpu_custom_call.1} parent=23 // pred_fallthru
          _
        %s141 = sand.u32 %s40, 1
        %s142 = scalar_lea.sflag [#allocation3], %s141
        %s143 = sand.u32 %s40, 1
        %s144 = smul.addr %s143, 128
        %s145 = scalar_lea.vmem [#allocation2], %s144
        %p146 = pneg %p53
        %p147 = pneg %p50
        %p148 = pneg %p81
        %p149 = pneg %p78
        %s150 = sand.u32 %s68, 1
        %s151 = scalar_lea.sflag [#allocation4], %s150
        %s152 = sand.u32 %s68, 1
        %s153 = smul.addr %s152, 128
        %s154 = scalar_lea.vmem [#allocation5], %s153
        %s155 = smul.u32 16, %s23
        %s156 = smul.u32 16, %s22
        %v157 = vld [vmem:[%s135] sm:$0xff]
        %v158 = vld [vmem:[%s135 + $0x8] sm:$0xff]
        %v159 = vld [vmem:[%s135 + $0x10] sm:$0xff]
        %v160 = vld [vmem:[%s135 + $0x18] sm:$0xff]
        %v161 = vld [vmem:[%s135 + $0x20] sm:$0xff]
        %v162 = vld [vmem:[%s135 + $0x28] sm:$0xff]
        %v163 = vld [vmem:[%s135 + $0x30] sm:$0xff]
        %v164 = vld [vmem:[%s135 + $0x38] sm:$0xff]
        %v165 = vld [vmem:[%s135 + $0x40] sm:$0xff]
        %v166 = vld [vmem:[%s135 + $0x48] sm:$0xff]
        %v167 = vld [vmem:[%s135 + $0x50] sm:$0xff]
        %v168 = vld [vmem:[%s135 + $0x58] sm:$0xff]
        %v169 = vld [vmem:[%s135 + $0x60] sm:$0xff]
        %v170 = vld [vmem:[%s135 + $0x68] sm:$0xff]
        %v171 = vld [vmem:[%s135 + $0x70] sm:$0xff]
        %v172 = vld [vmem:[%s135 + $0x78] sm:$0xff]
        %173 = vxpose.xlu0.b32.start [1/16] %v157, 128
        %174 = vxpose.xlu0.b32.cont [2/16] %v158, 128
        %175 = vxpose.xlu0.b32.cont [3/16] %v159, 128
        %176 = vxpose.xlu0.b32.cont [4/16] %v160, 128
        %177 = vxpose.xlu0.b32.cont [5/16] %v161, 128
        %178 = vxpose.xlu0.b32.cont [6/16] %v162, 128
        %179 = vxpose.xlu0.b32.cont [7/16] %v163, 128
        %180 = vxpose.xlu0.b32.cont [8/16] %v164, 128
        %181 = vxpose.xlu0.b32.cont [9/16] %v165, 128
        %182 = vxpose.xlu0.b32.cont [10/16] %v166, 128
        %183 = vxpose.xlu0.b32.cont [11/16] %v167, 128
        %184 = vxpose.xlu0.b32.cont [12/16] %v168, 128
        %185 = vxpose.xlu0.b32.cont [13/16] %v169, 128
        %186 = vxpose.xlu0.b32.cont [14/16] %v170, 128
        %187 = vxpose.xlu0.b32.cont [15/16] %v171, 128
        %188 = vxpose.xlu0.b32.end [16/16] %v172, 128
        %v189 = vpop.trf.xlu0
        %v190 = vpop.trf.xlu0
        %v191 = vpop.trf.xlu0
        %v192 = vpop.trf.xlu0
        %v193 = vpop.trf.xlu0
        %v194 = vpop.trf.xlu0
        %v195 = vpop.trf.xlu0
        %v196 = vpop.trf.xlu0
        %v197 = vpop.trf.xlu0
        %v198 = vpop.trf.xlu0
        %v199 = vpop.trf.xlu0
        %v200 = vpop.trf.xlu0
        %v201 = vpop.trf.xlu0
        %v202 = vpop.trf.xlu0
        %v203 = vpop.trf.xlu0
        %v204 = vpop.trf.xlu0
        %205 = vst [vmem:[%s154] sm:$0xff] %v189
        %206 = vst [vmem:[%s154 + $0x8] sm:$0xff] %v190
        %207 = vst [vmem:[%s154 + $0x10] sm:$0xff] %v191
        %208 = vst [vmem:[%s154 + $0x18] sm:$0xff] %v192
        %209 = vst [vmem:[%s154 + $0x20] sm:$0xff] %v193
        %210 = vst [vmem:[%s154 + $0x28] sm:$0xff] %v194
        %211 = vst [vmem:[%s154 + $0x30] sm:$0xff] %v195
        %212 = vst [vmem:[%s154 + $0x38] sm:$0xff] %v196
        %213 = vst [vmem:[%s154 + $0x40] sm:$0xff] %v197
        %214 = vst [vmem:[%s154 + $0x48] sm:$0xff] %v198
        %215 = vst [vmem:[%s154 + $0x50] sm:$0xff] %v199
        %216 = vst [vmem:[%s154 + $0x58] sm:$0xff] %v200
        %217 = vst [vmem:[%s154 + $0x60] sm:$0xff] %v201
        %218 = vst [vmem:[%s154 + $0x68] sm:$0xff] %v202
        %219 = vst [vmem:[%s154 + $0x70] sm:$0xff] %v203
        %220 = vst [vmem:[%s154 + $0x78] sm:$0xff] %v204
        %s221 = sand.u32 %s68, 1
        %s222 = scalar_lea.sflag [#allocation4], %s221
        %s223 = sand.u32 %s68, 1
        %s224 = smul.addr %s223, 128
        %s225 = scalar_lea.vmem [#allocation5], %s224
        // Predicated region
        $region29: #{tpu_custom_call.1} parent=23 // pred_check
          %p226 = pneg %p78
        $region30: #{tpu_custom_call.1} parent=23 // pred_check_branch
          %228 = sbr.rel (%p226) target = $region32
        $region31: #{tpu_custom_call.1} parent=23 // pred_region
          %s229 = smul.u32 16, %s22
          %231 = vsyncadd %s222, 0
          %s232 = smul.addr %s229, 2
          %s233 = sadd.s32 %s23, %s232
          %s234 = smul.addr %s233, 8
          %s235 = scalar_lea.hbm %s1, %s234
          %s236 = sshll.u32 %s225, 4
          %s237 = int_to_ptr.vmem [resolvable:$true] %s236
          %s238 = sshll.u32 %s235, 4
          %s239 = int_to_ptr.hbm [resolvable:$true] %s238
          %244 = dma.vmem_to_hbm [thread:$0]  %s237, 2048, %s239, %s222, 128, 256, 8
        $region32: #{tpu_custom_call.1} parent=23 // pred_fallthru
          _
      $region24: #{tpu_custom_call.1} parent=5 // pred_fallthru
        _
      %p245 = scmp.le.s32.totalorder 2, %s13
      // Predicated region
      $region33: #{tpu_custom_call.1} parent=5 // pred_check
        %p246 = pneg %p245
      $region34: #{tpu_custom_call.1} parent=5 // pred_check_branch
        %248 = sbr.rel (%p246) target = $region36
      $region35: #{tpu_custom_call.1} parent=5 // pred_region
        %s249 = ssub.s32 %s13, 2
        // Predicated region
        $region37: #{tpu_custom_call.1} parent=35 // pred_check
          %p250 = pneg %p84
        $region38: #{tpu_custom_call.1} parent=35 // pred_check_branch
          %252 = sbr.rel (%p250) target = $region40
        $region39: #{tpu_custom_call.1} parent=35 // pred_region
          %s253 = sand.u32 %s69, 1
          %s254 = scalar_lea.sflag [#allocation4], %s253
          %s255 = sand.u32 %s69, 1
          %s256 = smul.addr %s255, 128
          %s257 = scalar_lea.vmem [#allocation5], %s256
          %259 = dma.done %s254, 2048
        $region40: #{tpu_custom_call.1} parent=35 // pred_fallthru
          _
      $region36: #{tpu_custom_call.1} parent=5 // pred_fallthru
        _
    $region6: #{tpu_custom_call.1} parent=1 // loop_footer
      %s17 = sadd.s32 1, %s13
    $region7: #{tpu_custom_call.1} parent=1 // loop_footer_branch
      %12 = sbr.rel target = $region3
    $region8: #{tpu_custom_call.1} parent=1 // loop_exit
      _
    %260 = vsyncpa [#allocation3], 1
    %s261 = scalar_lea.sflag [#allocation3], 1
    %262 = vsyncpa %s261, 1
    %263 = vsyncpa [#allocation4], 1
    %s264 = scalar_lea.sflag [#allocation4], 1
    %265 = vsyncpa %s264, 1

</llo_original>
